<compile_context>
chip_gen: v5e
topology: v5e:2x2
jax: 0.10.0
libtpu: 0.0.40
codegen_flags: <defaults>
</compile_context>

<pallas_src>
import functools

import jax
import jax.numpy as jnp
from jax.experimental import pallas as pl
from jax.experimental.pallas import tpu as pltpu


def _round_up(x, m):
    return ((x + m - 1) // m) * m


def _quantize_kernel(interval_ref, w_ref, o_ref, *, bit_width):
    # interval lives in SMEM as a single f32 scalar; clamp to [1e-5, inf).
    interval = jnp.maximum(interval_ref[0], jnp.float32(1e-5))
    max_val = jnp.float32(2.0 ** (bit_width - 1) - 1.0)
    min_val = jnp.float32(-(2.0 ** (bit_width - 1)))

    w = w_ref[...].astype(jnp.float32)            # math in f32 regardless of storage dtype
    # True divide (not scalar-reciprocal multiply) for bit-parity with the
    # PyTorch module / JAX reference; the kernel is memory-bound so it's free.
    w_clamped = jnp.clip(w / interval, min_val, max_val)
    o_ref[...] = (jnp.round(w_clamped) * interval).astype(o_ref.dtype)


def quantize_weights(w, interval, bit_width, *, max_block_elems=1 << 20):
    """Pallas implementation of QuantizeWeights.forward.

    w        : arbitrary-shape floating-point weight tensor (f32 / bf16 kept in
               their storage dtype across the pallas_call boundary)
    interval : scalar (the nn.Parameter value)
    """
    orig_shape = w.shape
    orig_dtype = w.dtype
    n = int(w.size)
    if n == 0:
        return w

    flat = w.reshape(-1)                          # free (bitcast) reshape

    # Rare odd-size fallback: pad by <=7 elements so the slab has 8 rows.  Every
    # realistic weight has size % 8 == 0 and takes the copy-free path.
    pad_tail = (-n) % 8
    if pad_tail:
        flat = jnp.pad(flat, (0, pad_tail))
    n8 = n + pad_tail
    C = n8 // 8
    w2d = flat.reshape(8, C)                      # free reshape: (8, C) lane-dense slab

    # ---- lane-block sizing --------------------------------------------------
    # Block = (8, lb): lb a multiple of 128 (ragged last block auto-masked by
    # Pallas) or the full lane extent for tiny tensors.  Aim for ~max_block_elems
    # elements per block, but never fewer than 2 grid steps (ideally an even
    # count) when the slab is big enough, so v7x uses both TensorCores.
    target_lanes = max(128, ((max_block_elems // 8) // 128) * 128)
    if C < 256:
        lb = C                                    # single full-extent block
        grid_len = 1
    else:
        half = _round_up(pl.cdiv(C, 2), 128)      # >=2 blocks -> both TCs on v7x
        lb = int(min(target_lanes, half))
        grid_len = int(pl.cdiv(C, lb))
        if grid_len > 1 and grid_len % 2 == 1:    # prefer an even grid (TC balance)
            lb2 = _round_up(pl.cdiv(C, grid_len + 1), 128)
            if lb2 >= 128:
                lb = int(lb2)
                grid_len = int(pl.cdiv(C, lb))

    interval_arr = jnp.asarray(interval, dtype=jnp.float32).reshape((1,))

    out = pl.pallas_call(
        functools.partial(_quantize_kernel, bit_width=bit_width),
        out_shape=jax.ShapeDtypeStruct((8, C), orig_dtype),
        grid_spec=pltpu.PrefetchScalarGridSpec(
            num_scalar_prefetch=0,
            grid=(grid_len,),
            in_specs=[
                pl.BlockSpec(memory_space=pltpu.SMEM),          # interval scalar
                pl.BlockSpec((8, lb), lambda j: (0, j)),         # weight slab tile
            ],
            out_specs=pl.BlockSpec((8, lb), lambda j: (0, j)),
        ),
        compiler_params=pltpu.CompilerParams(
            dimension_semantics=("parallel",),                   # shards grid over 2 TCs on v7x
            vmem_limit_bytes=32 * 1024 * 1024,                   # legal on v5e/v6e/v7x
        ),
    )(interval_arr, w2d)

    out = out.reshape(-1)
    if pad_tail:
        out = out[:n]
    return out.reshape(orig_shape)


def quantize_weights_batched(weights, interval, bit_width, *,
                             small_bytes=256 * 1024, **kwargs):
    """Quantize several tensors sharing one interval.

    Only tensors small enough that pallas_call launch overhead dominates are
    concatenated into a single call; large tensors get their own call so we
    don't add extra full-tensor HBM passes (concatenate + slices)."""
    same_dtype = len({x.dtype for x in weights}) == 1
    all_small = all(int(x.size) * x.dtype.itemsize <= small_bytes for x in weights)
    if same_dtype and all_small and len(weights) > 1:
        sizes = [int(x.size) for x in weights]
        flat = jnp.concatenate([x.reshape(-1) for x in weights])
        q = quantize_weights(flat, interval, bit_width, **kwargs)
        outs, off = [], 0
        for x, s in zip(weights, sizes):
            outs.append(q[off:off + s].reshape(x.shape))
            off += s
        return outs
    return [quantize_weights(x, interval, bit_width, **kwargs) for x in weights]


def quantize_weights_ref(w, interval, bit_width):
    """Pure-JAX reference mirroring the PyTorch forward."""
    interval = jnp.maximum(jnp.asarray(interval, jnp.float32), 1e-5)
    max_val = 2.0 ** (bit_width - 1) - 1.0
    min_val = -(2.0 ** (bit_width - 1))
    w_clamped = jnp.clip(w.astype(jnp.float32) / interval, min_val, max_val)
    return (jnp.round(w_clamped) * interval).astype(w.dtype)


def initialize_interval(w, bit_width):
    """Mirror of QuantizeWeights.initialize_interval (plain JAX glue)."""
    max_val = jnp.max(w)
    min_val = jnp.min(w)
    return ((max_val - min_val) / (2.0 ** (bit_width - 1) - 1.0)).astype(jnp.float32)


if __name__ == "__main__":
    key = jax.random.PRNGKey(0)
    k1, k2, k3, k4, k5 = jax.random.split(key, 5)
    bit_width = 4

    # 1) Small conv weight (OIHW): copy-free (8, C) path, single block.
    w1 = jax.random.normal(k1, (8, 4, 3, 3), dtype=jnp.float32)
    iv1 = initialize_interval(w1, bit_width)
    out1 = jax.block_until_ready(quantize_weights(w1, iv1, bit_width))
    ref1 = quantize_weights_ref(w1, iv1, bit_width)
    assert out1.shape == w1.shape and out1.dtype == w1.dtype
    assert jnp.allclose(out1, ref1, atol=1e-6, rtol=1e-6), "f32 small mismatch"

    # 2) Conv weight whose flat size is NOT a multiple of 1024 — default config:
    #    no pad/slice, 2-step parallel grid with a ragged (Pallas-masked) block.
    w2 = jax.random.normal(k2, (16, 16, 3, 3), dtype=jnp.float32)
    iv2 = initialize_interval(w2, bit_width)
    out2 = jax.block_until_ready(quantize_weights(w2, iv2, bit_width))
    ref2 = quantize_weights_ref(w2, iv2, bit_width)
    assert jnp.allclose(out2, ref2, atol=1e-6, rtol=1e-6), "default-grid mismatch"

    # 2b) Same weight with a tiny block override to exercise a >2-step grid.
    out2b = jax.block_until_ready(
        quantize_weights(w2, iv2, bit_width, max_block_elems=1024))
    assert jnp.allclose(out2b, ref2, atol=1e-6, rtol=1e-6), "multi-block mismatch"

    # 3) bf16 weights stay bf16 across the pallas_call boundary (math in f32).
    w3 = jax.random.normal(k3, (16, 16, 3, 3), dtype=jnp.bfloat16)
    iv3 = initialize_interval(w3, bit_width)
    out3 = jax.block_until_ready(quantize_weights(w3, iv3, bit_width))
    ref3 = quantize_weights_ref(w3, iv3, bit_width)
    assert out3.dtype == jnp.bfloat16
    assert jnp.allclose(out3.astype(jnp.float32), ref3.astype(jnp.float32),
                        atol=1e-6, rtol=1e-6), "bf16 mismatch"

    # 4) Odd flat size (135 = 3*3*3*5): rare fallback path (<=7-element pad).
    w4 = jax.random.normal(k4, (3, 3, 3, 5), dtype=jnp.float32)
    iv4 = initialize_interval(w4, bit_width)
    out4 = jax.block_until_ready(quantize_weights(w4, iv4, bit_width))
    ref4 = quantize_weights_ref(w4, iv4, bit_width)
    assert out4.shape == w4.shape
    assert jnp.allclose(out4, ref4, atol=1e-6, rtol=1e-6), "odd-size mismatch"

    # 5) Batched path: several small parameters sharing one interval.
    wa = jax.random.normal(k5, (4, 4, 3, 3), dtype=jnp.float32)
    wb = jax.random.normal(k5, (8,), dtype=jnp.float32)
    ivb = initialize_interval(wa, bit_width)
    qa, qb = quantize_weights_batched([wa, wb], ivb, bit_width)
    qa = jax.block_until_ready(qa)
    qb = jax.block_until_ready(qb)
    assert jnp.allclose(qa, quantize_weights_ref(wa, ivb, bit_width),
                        atol=1e-6, rtol=1e-6), "batched (a) mismatch"
    assert jnp.allclose(qb, quantize_weights_ref(wb, ivb, bit_width),
                        atol=1e-6, rtol=1e-6), "batched (b) mismatch"

    print("KERNEL_OK")
</pallas_src>

<mosaic_0001>
module attributes {stable_mosaic.version = 11 : i64} {
  func.func @_quantize_kernel(%arg0: i32, %arg1: memref<1xf32, #tpu.memory_space<smem>>, %arg2: memref<8x36xf32, #tpu.memory_space<vmem>>, %arg3: memref<8x36xf32, #tpu.memory_space<vmem>>) attributes {dimension_semantics = [#tpu.dimension_semantics<parallel>], iteration_bounds = array<i64: 1>, scalar_prefetch = 0 : i64, scratch_operands = 0 : i64, tpu.core_type = #tpu.core_type<tc>, window_params = [{transform_indices = @transform_0, window_bounds = array<i64: 1>}, {transform_indices = @transform_1, window_bounds = array<i64: 8, 36>}, {transform_indices = @transform_2, window_bounds = array<i64: 8, 36>}]} {
    %c0 = arith.constant 0 : index
    %0 = memref.load %arg1[%c0] : memref<1xf32, #tpu.memory_space<smem>>
    %cst = arith.constant 9.99999974E-6 : f32
    %1 = arith.maximumf %0, %cst : f32
    %c0_0 = arith.constant 0 : index
    %c0_1 = arith.constant 0 : index
    %2 = vector.load %arg2[%c0_0, %c0_1] : memref<8x36xf32, #tpu.memory_space<vmem>>, vector<8x36xf32>
    %3 = vector.broadcast %1 : f32 to vector<8x36xf32>
    %4 = arith.divf %2, %3 : vector<8x36xf32>
    %cst_2 = arith.constant -8.000000e+00 : f32
    %cst_3 = arith.constant 7.000000e+00 : f32
    %5 = vector.broadcast %cst_2 : f32 to vector<8x36xf32>
    %6 = arith.maximumf %5, %4 : vector<8x36xf32>
    %7 = vector.broadcast %cst_3 : f32 to vector<8x36xf32>
    %8 = arith.minimumf %7, %6 : vector<8x36xf32>
    %9 = math.roundeven %8 : vector<8x36xf32>
    %10 = vector.broadcast %1 : f32 to vector<8x36xf32>
    %11 = arith.mulf %9, %10 : vector<8x36xf32>
    %c0_4 = arith.constant 0 : index
    %c0_5 = arith.constant 0 : index
    %12 = vector.load %arg3[%c0_4, %c0_5] : memref<8x36xf32, #tpu.memory_space<vmem>>, vector<8x36xf32>
    tpu.vector_store %arg3[%c0_4, %c0_5], %11 {strides = array<i32>} : memref<8x36xf32, #tpu.memory_space<vmem>>, vector<8x36xf32>,
    return
  }
  func.func @transform_0(%arg0: i32) -> i32 {
    %c0_i32 = arith.constant 0 : i32
    %c0_i32_0 = arith.constant 0 : i32
    return %c0_i32 : i32
  }
  func.func @transform_1(%arg0: i32) -> (i32, i32) {
    %c0_i32 = arith.constant 0 : i32
    %c0_i32_0 = arith.constant 0 : i32
    return %c0_i32, %arg0 : i32, i32
  }
  func.func @transform_2(%arg0: i32) -> (i32, i32) {
    %c0_i32 = arith.constant 0 : i32
    %c0_i32_0 = arith.constant 0 : i32
    return %c0_i32, %arg0 : i32, i32
  }
}

</mosaic_0001>

<llo_original>
// kernel: tpu_custom_call.1
$region0: #{tpu_custom_call.1}
  #allocation0 [shape = 'u32[]', space=smem, size = 0x4, offset = 0x4, fixed_abs, tag = 'smem constant byte address 0x4 - core index']
  #allocation1 [shape = 'u32[72,128]{1,0:T(1,128)}', space=vmem, size = 0x9000, scoped, tag = 'internal scratch']
  #allocation2 [shape = 'f32[1]{0:T(128)S(6)}', space=smem, size = 0x200, scoped, tag = 'scoped memory for tpu_custom_call.1']
  %s0 = inlined_call_operand.<no memory space> [shape: f32[1], index: 0, kind: input, shape index: {}]
  %s1 = inlined_call_operand.hbm [shape: f32[8,36], index: 1, kind: input, shape index: {}]
  %s2 = inlined_call_operand.hbm [shape: f32[8,36], index: 2, kind: output, shape index: {}]
  %s3 = sld [smem:[#allocation0]]
  $region22: #{tpu_custom_call.1} parent=0
    _
  %s5 = ssub.s32 1, %s3
  %s6 = scalar_select 0, %s5, %s3
  %7 = sst [smem:[#allocation2]] %s0
  $region1: #{tpu_custom_call.1} parent=0
    #allocation3 [shape = 'u8[4096]{0}', space=vmem, size = 0x1000, scoped, tag = 'input window, operand 1, single buffered']
    #allocation4 [shape = 's32[1]{0}', space=sflag, size = 0x4, scoped, tag = 'scoped memory for tpu_custom_call.1']
    #allocation5 [shape = 's32[1]{0}', space=sflag, size = 0x4, scoped, tag = 'scoped memory for tpu_custom_call.1']
    #allocation6 [shape = 'u8[4096]{0}', space=vmem, size = 0x1000, scoped, tag = 'output window, operand 0, single buffered']
    %8 = vsyncpa [#allocation4], 0
    %9 = vsyncpa [#allocation5], 0
    // Predicated region
    $region2: #{tpu_custom_call.1} parent=1 // pred_check
      _
    $region3: #{tpu_custom_call.1} parent=1 // pred_check_branch
      %11 = sbr.rel (0) target = $region5
    $region4: #{tpu_custom_call.1} parent=1 // pred_region
      _
    $region5: #{tpu_custom_call.1} parent=1 // pred_fallthru
      _
    // Predicated region
    $region6: #{tpu_custom_call.1} parent=1 // pred_check
      _
    $region7: #{tpu_custom_call.1} parent=1 // pred_check_branch
      %13 = sbr.rel (0) target = $region9
    $region8: #{tpu_custom_call.1} parent=1 // pred_region
      %15 = vsyncadd [#allocation4], 0
      %s17 = sshll.u32 %s1, 4
      %s18 = int_to_ptr.hbm [resolvable:$true] %s17
      %s19 = sshll.u32 [#allocation3], 4
      %s20 = int_to_ptr.vmem [resolvable:$true] %s19
      %22 = dma.hbm_to_vmem [thread:$0]  %s18, 128, %s20, [#allocation4]
    $region9: #{tpu_custom_call.1} parent=1 // pred_fallthru
      _
    // Predicated region
    $region10: #{tpu_custom_call.1} parent=1 // pred_check
      _
    $region11: #{tpu_custom_call.1} parent=1 // pred_check_branch
      %24 = sbr.rel (0) target = $region13
    $region12: #{tpu_custom_call.1} parent=1 // pred_region
      %26 = dma.done [#allocation4], 128
    $region13: #{tpu_custom_call.1} parent=1 // pred_fallthru
      _
    %s27 = sld [smem:[#allocation2]]
    %s28 = smax.f32 %s27, 1e-05
    %v29 = vld [vmem:[#allocation3] sm:$0xff]
    %v30 = vstv %s28
    %v31 = vrcp.pop %v30
    %v32 = vmul.f32 %v30, %v31
    %v33 = vsub.f32 1.0, %v32
    %v34 = vmul.f32 %v31, %v33
    %v35 = vadd.f32 %v31, %v34
    %vm36 = vweird.f32 %v30
    %vm37 = vweird.f32 %v31
    %vm38 = vmor %vm36, %vm37
    %v39 = vsel %vm38, %v31, %v35
    %v40 = vand.u32 2147483647, %v30
    %vm41 = vcmp.eq.f32.partialorder %v40, 8.507059e+37
    %v42 = vand.u32 %v30, 2147483648
    %v43 = vor.u32 1.1754944e-38, %v42
    %v44 = vsel %vm41, %v43, %v39
    %v45 = vmul.f32 %v29, %v44
    %v46 = vmax.f32 %v45, -8.0
    %v47 = vmin.f32 %v46, 7.0
    %v48 = vround.ne.pseudo %v47
    %v49 = vmul.f32 %v48, %v30
    %vm50 = vcmask 293888
    %51 = vst.msk [vmem:[#allocation6] sm:$0xff] %vm50, %v49
    // Predicated region
    $region14: #{tpu_custom_call.1} parent=1 // pred_check
      _
    $region15: #{tpu_custom_call.1} parent=1 // pred_check_branch
      %53 = sbr.rel (0) target = $region17
    $region16: #{tpu_custom_call.1} parent=1 // pred_region
      %55 = vsyncadd [#allocation5], 0
      %s57 = sshll.u32 [#allocation6], 4
      %s58 = int_to_ptr.vmem [resolvable:$true] %s57
      %s59 = sshll.u32 %s2, 4
      %s60 = int_to_ptr.hbm [resolvable:$true] %s59
      %62 = dma.vmem_to_hbm [thread:$0]  %s58, 128, %s60, [#allocation5]
    $region17: #{tpu_custom_call.1} parent=1 // pred_fallthru
      _
    // Predicated region
    $region18: #{tpu_custom_call.1} parent=1 // pred_check
      _
    $region19: #{tpu_custom_call.1} parent=1 // pred_check_branch
      %64 = sbr.rel (0) target = $region21
    $region20: #{tpu_custom_call.1} parent=1 // pred_region
      %66 = dma.done [#allocation5], 128
    $region21: #{tpu_custom_call.1} parent=1 // pred_fallthru
      _
    %67 = vsyncpa [#allocation4], 1
    %68 = vsyncpa [#allocation5], 1

</llo_original>
